<compile_context>
chip_gen: v6e
topology: v6e:2x2x1
jax: 0.10.0
libtpu: 0.0.40
codegen_flags: <defaults>
</compile_context>

<pallas_src>
import functools

import jax
import jax.numpy as jnp
from jax.experimental import pallas as pl
from jax.experimental.pallas import tpu as pltpu


# --------------------------------------------------------------------------
# helpers
# --------------------------------------------------------------------------
def _round_up(a, b):
    return ((a + b - 1) // b) * b


def _round_down(a, b):
    return (a // b) * b


def _vmem_capacity_bytes():
    """Physical VMEM of the current TPU generation (64 MiB fallback)."""
    try:
        info = pltpu.get_tpu_info()
        for attr in ("vmem_capacity_bytes", "vmem_size_bytes", "vmem_bytes"):
            v = getattr(info, attr, None)
            if v:
                return int(v)
    except Exception:
        pass
    return 64 * 1024 * 1024  # safe for v7x; v5e/v6e just get smaller blocks


def _pick_tiles(nc, hw, itemsize, budget):
    """Pick (rb, hwb) block shape for a (nc, hw) array.

    rb is a multiple of 8 (or == nc); hwb is a multiple of 128 (or == hw).
    The padded block (rb_pad x hwb_pad x itemsize) stays within `budget`.
    Lane tile is maximized first (long contiguous DMA rows), then rows fold
    as many images*channels as fit.
    """
    nc_pad = _round_up(nc, 8)
    hw_pad = _round_up(hw, 128)
    min_rows_pad = 8

    max_hwb = _round_down(budget // (min_rows_pad * itemsize), 128)
    max_hwb = max(max_hwb, 128)
    if hw_pad <= max_hwb:
        hwb = hw                      # full spatial extent in one lane tile
        hwb_pad = hw_pad
    else:
        hwb = max_hwb                 # multiple of 128
        hwb_pad = max_hwb

    rb = budget // (hwb_pad * itemsize)
    if rb >= nc_pad:
        rb = nc                       # full rows (legal even if not %8)
    else:
        rb = max(_round_down(rb, 8), 8)
        if rb > nc:
            rb = nc
    return rb, hwb


# --------------------------------------------------------------------------
# fused single-pass kernel (whole activation resident in VMEM)
# --------------------------------------------------------------------------
def _fused_kernel(x_ref, w_ref, b_ref, o_ref, *, m_total, eps):
    xf = x_ref[...].astype(jnp.float32)                       # (N, C, HW)
    inv_m = jnp.float32(1.0 / m_total)
    s = jnp.sum(xf, axis=(0, 2), keepdims=True)               # (1, C, 1)
    sq = jnp.sum(xf * xf, axis=(0, 2), keepdims=True)
    mean = s * inv_m
    var = jnp.maximum(sq * inv_m - mean * mean, 0.0)
    scale = w_ref[...] * jax.lax.rsqrt(var + jnp.float32(eps))
    shift = b_ref[...] - mean * scale
    o_ref[...] = (xf * scale + shift).astype(o_ref.dtype)


# --------------------------------------------------------------------------
# streaming pass 1: per-row lane-wide partial sums / sum-of-squares
# --------------------------------------------------------------------------
def _stats_kernel(x_ref, sum_ref, sq_ref, *, hwb, hw_total, mask_lanes):
    h = pl.program_id(1)

    @pl.when(h == 0)
    def _init():
        sum_ref[...] = jnp.zeros_like(sum_ref)
        sq_ref[...] = jnp.zeros_like(sq_ref)

    rb = x_ref.shape[0]
    k_full = hwb // 128
    rem = hwb - k_full * 128

    if mask_lanes:
        # Valid-lane count for this tile (>= hwb for every non-last tile).
        limit = hw_total - h * hwb
        lane_iota = jax.lax.broadcasted_iota(jnp.int32, (rb, 128), 1)

    if k_full > 0:
        def chunk(j, carry):
            s, q = carry
            off = pl.multiple_of(j * 128, 128)
            c = x_ref[:, pl.ds(off, 128)].astype(jnp.float32)   # (rb, 128)
            if mask_lanes:
                c = jnp.where((lane_iota + j * 128) < limit, c, jnp.float32(0))
            return s + c, q + c * c

        zero = jnp.zeros((rb, 128), jnp.float32)
        s, q = jax.lax.fori_loop(0, k_full, chunk, (zero, zero),
                                 unroll=min(8, k_full))
        sum_ref[...] += s
        sq_ref[...] += q

    if rem:
        # Ragged tail (only when hwb == full HW and HW % 128 != 0; single hw
        # tile). Fold its per-row sums into lane 0 — the wrapper reduces over
        # all 128 lanes anyway.
        t = x_ref[:, pl.ds(k_full * 128, rem)].astype(jnp.float32)
        sum_ref[:, 0:1] += jnp.sum(t, axis=1, keepdims=True)
        sq_ref[:, 0:1] += jnp.sum(t * t, axis=1, keepdims=True)


# --------------------------------------------------------------------------
# streaming pass 2: y = x * scale[row] + shift[row]
# --------------------------------------------------------------------------
def _norm_kernel(scale_ref, shift_ref, x_ref, o_ref):
    xf = x_ref[...].astype(jnp.float32)
    o_ref[...] = (xf * scale_ref[...] + shift_ref[...]).astype(o_ref.dtype)


# --------------------------------------------------------------------------
# wrapper
# --------------------------------------------------------------------------
def aug_batchnorm2d(x_nchw, weight, bias, eps=1e-5, *,
                    force_two_pass=False, max_block_bytes=None):
    """Forward of aug_BatchNorm2d (training-mode batch stats).

    x_nchw : (N, C, H, W)
    weight : (1, C, 1, 1)
    bias   : (1, C, 1, 1)
    """
    N, C, H, W = x_nchw.shape
    HW = H * W
    NC = N * C
    itemsize = jnp.dtype(x_nchw.dtype).itemsize
    m_total = float(N * HW)

    vmem_cap = _vmem_capacity_bytes()
    vmem_limit = min((vmem_cap * 3) // 4, 96 * 1024 * 1024)

    w_c = weight.reshape(C).astype(jnp.float32)
    b_c = bias.reshape(C).astype(jnp.float32)

    # ---- fused single-pass path: 1 read + 1 write of x ----
    cpad = _round_up(C, 8)
    hwpad = _round_up(HW, 128)
    # in + out blocks plus ~3 f32-sized temporaries, on padded extents.
    fused_bytes = N * cpad * hwpad * (2 * itemsize + 12)
    if (not force_two_pass) and fused_bytes <= (vmem_limit * 3) // 4:
        x3 = x_nchw.reshape(N, C, HW)
        out3 = pl.pallas_call(
            functools.partial(_fused_kernel, m_total=m_total, eps=float(eps)),
            out_shape=jax.ShapeDtypeStruct((N, C, HW), x3.dtype),
            compiler_params=pltpu.CompilerParams(vmem_limit_bytes=vmem_limit),
        )(x3, w_c.reshape(1, C, 1), b_c.reshape(1, C, 1))
        return out3.reshape(N, C, H, W)

    # ---- streaming two-pass path: 2 reads + 1 write of x (HBM floor) ----
    x2 = x_nchw.reshape(NC, HW)
    budget = max_block_bytes if max_block_bytes is not None else vmem_limit // 6
    rb, hwb = _pick_tiles(NC, HW, itemsize, budget)
    row_blocks = pl.cdiv(NC, rb)
    hw_tiles = pl.cdiv(HW, hwb)
    mask_lanes = (HW % hwb) != 0

    # Pass 1: per-row (NC, 128) lane-wide partial sums / sumsq.
    stats_kernel = functools.partial(
        _stats_kernel, hwb=hwb, hw_total=HW, mask_lanes=mask_lanes)
    psum, psq = pl.pallas_call(
        stats_kernel,
        out_shape=(jax.ShapeDtypeStruct((NC, 128), jnp.float32),
                   jax.ShapeDtypeStruct((NC, 128), jnp.float32)),
        grid=(row_blocks, hw_tiles),
        in_specs=[pl.BlockSpec((rb, hwb), lambda r, h: (r, h))],
        out_specs=[pl.BlockSpec((rb, 128), lambda r, h: (r, 0)),
                   pl.BlockSpec((rb, 128), lambda r, h: (r, 0))],
        compiler_params=pltpu.CompilerParams(
            dimension_semantics=("parallel", "arbitrary"),
            vmem_limit_bytes=vmem_limit),
    )(x2)

    # Tiny finalize in plain JAX (keeps pass 1 race-free & megacore-friendly).
    # TODO(synk): E[x^2]-E[x]^2 in f32 can lose precision for |mean| >> std.
    row_sum = jnp.sum(psum, axis=1)                    # (NC,)
    row_sq = jnp.sum(psq, axis=1)
    ch_sum = jnp.sum(row_sum.reshape(N, C), axis=0)    # (C,)
    ch_sq = jnp.sum(row_sq.reshape(N, C), axis=0)
    mean = ch_sum / m_total
    var = jnp.maximum(ch_sq / m_total - mean * mean, 0.0)
    scale_c = w_c * jax.lax.rsqrt(var + jnp.float32(eps))
    shift_c = b_c - mean * scale_c
    row_scale = jnp.broadcast_to(scale_c[None, :], (N, C)).reshape(NC, 1)
    row_shift = jnp.broadcast_to(shift_c[None, :], (N, C)).reshape(NC, 1)

    # Pass 2: normalize + affine, fully parallel streaming.
    out2 = pl.pallas_call(
        _norm_kernel,
        out_shape=jax.ShapeDtypeStruct((NC, HW), x2.dtype),
        grid=(row_blocks, hw_tiles),
        in_specs=[
            pl.BlockSpec((rb, 1), lambda r, h: (r, 0)),
            pl.BlockSpec((rb, 1), lambda r, h: (r, 0)),
            pl.BlockSpec((rb, hwb), lambda r, h: (r, h)),
        ],
        out_specs=pl.BlockSpec((rb, hwb), lambda r, h: (r, h)),
        compiler_params=pltpu.CompilerParams(
            dimension_semantics=("parallel", "parallel"),
            vmem_limit_bytes=vmem_limit),
    )(row_scale, row_shift, x2)

    return out2.reshape(N, C, H, W)


# --------------------------------------------------------------------------
# test
# --------------------------------------------------------------------------
if __name__ == "__main__":
    key = jax.random.PRNGKey(0)
    k1, k2 = jax.random.split(key)

    def reference(x, weight, bias, eps=1e-5):
        mean = jnp.mean(x, axis=(0, 2, 3), keepdims=True)
        var = jnp.mean((x - mean) ** 2, axis=(0, 2, 3), keepdims=True)
        return weight * ((x - mean) * jax.lax.rsqrt(var + eps)) + bias

    N, C, H, W = 2, 4, 16, 16
    x = jax.random.normal(k1, (N, C, H, W), dtype=jnp.float32) * 2.0 + 0.5
    # prob=None in the module -> gaussian_augment is identity; parameters are
    # deterministic (non-trivial values to exercise the affine path).
    weight = (jnp.ones((1, C, 1, 1), dtype=jnp.float32)
              + 0.1 * jnp.arange(C, dtype=jnp.float32).reshape(1, C, 1, 1))
    bias = 0.05 * jnp.arange(C, dtype=jnp.float32).reshape(1, C, 1, 1)

    # 1) fused single-pass path (small activation resident in VMEM).
    out_fused = jax.block_until_ready(aug_batchnorm2d(x, weight, bias))
    ref = reference(x, weight, bias)
    assert jnp.allclose(out_fused, ref, atol=1e-4, rtol=1e-4), "fused mismatch"

    # 2) streaming two-pass path (forced, aligned tiles).
    out_stream = jax.block_until_ready(
        aug_batchnorm2d(x, weight, bias, force_two_pass=True))
    assert jnp.allclose(out_stream, ref, atol=1e-4, rtol=1e-4), "stream mismatch"

    # 3) streaming path with unaligned spatial extent + tiny blocks to
    #    exercise cdiv tiling and lane masking.
    H2 = W2 = 20
    x_odd = jax.random.normal(k2, (N, C, H2, W2), dtype=jnp.float32) - 1.5
    out_masked = jax.block_until_ready(
        aug_batchnorm2d(x_odd, weight, bias, force_two_pass=True,
                        max_block_bytes=8 * 128 * 4))
    ref_odd = reference(x_odd, weight, bias)
    assert jnp.allclose(out_masked, ref_odd, atol=1e-4, rtol=1e-4), \
        "masked-stream mismatch"

    print("KERNEL_OK")
</pallas_src>

<mosaic_0001>
module attributes {stable_mosaic.version = 11 : i64} {
  func.func @_fused_kernel(%arg0: memref<2x4x256xf32, #tpu.memory_space<vmem>>, %arg1: memref<1x4x1xf32, #tpu.memory_space<vmem>>, %arg2: memref<1x4x1xf32, #tpu.memory_space<vmem>>, %arg3: memref<2x4x256xf32, #tpu.memory_space<vmem>>) attributes {dimension_semantics = [], scalar_prefetch = 0 : i64, scratch_operands = 0 : i64, tpu.core_type = #tpu.core_type<tc>} {
    %c0 = arith.constant 0 : index
    %c0_0 = arith.constant 0 : index
    %c0_1 = arith.constant 0 : index
    %0 = vector.load %arg0[%c0, %c0_0, %c0_1] : memref<2x4x256xf32, #tpu.memory_space<vmem>>, vector<2x4x256xf32>
    %cst = arith.constant dense<0.000000e+00> : vector<4xf32>
    %1 = vector.multi_reduction <add>, %0, %cst [0, 2] : vector<2x4x256xf32> to vector<4xf32>
    %2 = vector.shape_cast %1 : vector<4xf32> to vector<1x4x1xf32>
    %3 = arith.mulf %0, %0 : vector<2x4x256xf32>
    %cst_2 = arith.constant dense<0.000000e+00> : vector<4xf32>
    %4 = vector.multi_reduction <add>, %3, %cst_2 [0, 2] : vector<2x4x256xf32> to vector<4xf32>
    %5 = vector.shape_cast %4 : vector<4xf32> to vector<1x4x1xf32>
    %cst_3 = arith.constant 0.001953125 : f32
    %6 = vector.broadcast %cst_3 : f32 to vector<1x4x1xf32>
    %7 = arith.mulf %2, %6 : vector<1x4x1xf32>
    %cst_4 = arith.constant 0.001953125 : f32
    %8 = vector.broadcast %cst_4 : f32 to vector<1x4x1xf32>
    %9 = arith.mulf %5, %8 : vector<1x4x1xf32>
    %10 = arith.mulf %7, %7 : vector<1x4x1xf32>
    %11 = arith.subf %9, %10 : vector<1x4x1xf32>
    %cst_5 = arith.constant 0.000000e+00 : f32
    %12 = vector.broadcast %cst_5 : f32 to vector<1x4x1xf32>
    %13 = arith.maximumf %11, %12 : vector<1x4x1xf32>
    %c0_6 = arith.constant 0 : index
    %c0_7 = arith.constant 0 : index
    %c0_8 = arith.constant 0 : index
    %14 = vector.load %arg1[%c0_6, %c0_7, %c0_8] : memref<1x4x1xf32, #tpu.memory_space<vmem>>, vector<1x4x1xf32>
    %cst_9 = arith.constant 9.99999974E-6 : f32
    %15 = vector.broadcast %cst_9 : f32 to vector<1x4x1xf32>
    %16 = arith.addf %13, %15 : vector<1x4x1xf32>
    %17 = math.rsqrt %16 : vector<1x4x1xf32>
    %18 = arith.mulf %14, %17 : vector<1x4x1xf32>
    %c0_10 = arith.constant 0 : index
    %c0_11 = arith.constant 0 : index
    %c0_12 = arith.constant 0 : index
    %19 = vector.load %arg2[%c0_10, %c0_11, %c0_12] : memref<1x4x1xf32, #tpu.memory_space<vmem>>, vector<1x4x1xf32>
    %20 = arith.mulf %7, %18 : vector<1x4x1xf32>
    %21 = arith.subf %19, %20 : vector<1x4x1xf32>
    %22 = vector.broadcast %18 : vector<1x4x1xf32> to vector<2x4x256xf32>
    %23 = arith.mulf %0, %22 : vector<2x4x256xf32>
    %24 = vector.broadcast %21 : vector<1x4x1xf32> to vector<2x4x256xf32>
    %25 = arith.addf %23, %24 : vector<2x4x256xf32>
    %c0_13 = arith.constant 0 : index
    %c0_14 = arith.constant 0 : index
    %c0_15 = arith.constant 0 : index
    %26 = vector.load %arg3[%c0_13, %c0_14, %c0_15] : memref<2x4x256xf32, #tpu.memory_space<vmem>>, vector<2x4x256xf32>
    tpu.vector_store %arg3[%c0_13, %c0_14, %c0_15], %25 {strides = array<i32>} : memref<2x4x256xf32, #tpu.memory_space<vmem>>, vector<2x4x256xf32>,
    return
  }
}

</mosaic_0001>

<llo_original>
// kernel: tpu_custom_call.1
$region0: #{tpu_custom_call.1}
  #allocation0 [shape = 'u32[]', space=smem, size = 0x4, offset = 0x4, fixed_abs, tag = 'smem constant byte address 0x4 - core index']
  #allocation1 [shape = 'u32[144,128]{1,0:T(1,128)}', space=vmem, size = 0x12000, scoped, tag = 'internal scratch']
  %s0 = inlined_call_operand.hbm [shape: f32[2,4,256], index: 0, kind: input, shape index: {}]
  %s1 = inlined_call_operand.vmem [shape: f32[1,4,1], index: 1, kind: input, shape index: {}]
  %s2 = inlined_call_operand.vmem [shape: f32[1,4,1], index: 2, kind: input, shape index: {}]
  %s3 = inlined_call_operand.hbm [shape: f32[2,4,256], index: 3, kind: output, shape index: {}]
  %s4 = sld [smem:[#allocation0]]
  $region26: #{tpu_custom_call.1} parent=0
    _
  %s6 = ssub.s32 1, %s4
  %s7 = scalar_select 0, %s6, %s4
  $region1: #{tpu_custom_call.1} parent=0
    #allocation2 [shape = 'u8[8192]{0}', space=vmem, size = 0x2000, scoped, tag = 'input window, operand 0, single buffered']
    #allocation3 [shape = 's32[1]{0}', space=sflag, size = 0x4, scoped, tag = 'scoped memory for tpu_custom_call.1']
    #allocation4 [shape = 's32[1]{0}', space=sflag, size = 0x4, scoped, tag = 'scoped memory for tpu_custom_call.1']
    #allocation5 [shape = 'u8[8192]{0}', space=vmem, size = 0x2000, scoped, tag = 'output window, operand 0, single buffered']
    %8 = vsyncpa [#allocation3], 0
    %9 = vsyncpa [#allocation4], 0
    // Predicated region
    $region2: #{tpu_custom_call.1} parent=1 // pred_check
      _
    $region3: #{tpu_custom_call.1} parent=1 // pred_check_branch
      %11 = sbr.rel (0) target = $region5
    $region4: #{tpu_custom_call.1} parent=1 // pred_region
      %s13 = ssub.s32 256, 256
      %14 = vsyncadd [#allocation3], %s13
      %s15 = sshll.u32 [#allocation2], 4
      %s16 = int_to_ptr.vmem [resolvable:$true] %s15
      %21 = dma.hbm_to_vmem [thread:$0]  %s0, 256, %s16, [#allocation3], 128, 128, 8
    $region5: #{tpu_custom_call.1} parent=1 // pred_fallthru
      _
    // Predicated region
    $region6: #{tpu_custom_call.1} parent=1 // pred_check
      _
    $region7: #{tpu_custom_call.1} parent=1 // pred_check_branch
      %23 = sbr.rel (0) target = $region9
    $region8: #{tpu_custom_call.1} parent=1 // pred_region
      _
    $region9: #{tpu_custom_call.1} parent=1 // pred_fallthru
      _
    // Predicated region
    $region10: #{tpu_custom_call.1} parent=1 // pred_check
      _
    $region11: #{tpu_custom_call.1} parent=1 // pred_check_branch
      %25 = sbr.rel (0) target = $region13
    $region12: #{tpu_custom_call.1} parent=1 // pred_region
      _
    $region13: #{tpu_custom_call.1} parent=1 // pred_fallthru
      _
    // Predicated region
    $region14: #{tpu_custom_call.1} parent=1 // pred_check
      _
    $region15: #{tpu_custom_call.1} parent=1 // pred_check_branch
      %27 = sbr.rel (0) target = $region17
    $region16: #{tpu_custom_call.1} parent=1 // pred_region
      %28 = dma.done [#allocation3], 256
    $region17: #{tpu_custom_call.1} parent=1 // pred_fallthru
      _
    %v29 = vld [vmem:[#allocation2] sm:$0xff]
    %v30 = vld [vmem:[#allocation2 + $0x8] sm:$0xff]
    %v33 = vcombine.high %v29, %v29
    %v34 = vcombine.high %v30, %v30
    %vm37 = vcmask 1043456
    %v38 = vsel %vm37, %v29, 0.0
    %v39 = vsel %vm37, %v33, 0.0
    %v40 = vadd.f32 %v38, %v39
    %v41 = vsel %vm37, %v30, 0.0
    %v42 = vadd.f32 %v40, %v41
    %v43 = vsel %vm37, %v34, 0.0
    %v44 = vadd.f32 %v42, %v43
    %45 = vadd.xlane.f32.xlu0 %v44
    %v46 = vpop.xlane.xlu0 %45
    %v47 = vmul.f32 %v29, %v29
    %v48 = vmul.f32 %v30, %v30
    %v51 = vcombine.high %v47, %v47
    %v52 = vcombine.high %v48, %v48
    %v55 = vsel %vm37, %v47, 0.0
    %v56 = vsel %vm37, %v51, 0.0
    %v57 = vadd.f32 %v55, %v56
    %v58 = vsel %vm37, %v48, 0.0
    %v59 = vadd.f32 %v57, %v58
    %v60 = vsel %vm37, %v52, 0.0
    %v61 = vadd.f32 %v59, %v60
    %62 = vadd.xlane.f32.xlu0 %v61
    %v63 = vpop.xlane.xlu0 %62
    %v64 = vmul.f32 %v46, 0.001953125
    %v65 = vmul.f32 %v63, 0.001953125
    %v66 = vmul.f32 %v64, %v64
    %v67 = vsub.f32 %v65, %v66
    %v68 = vmax.f32 %v67, 0.0
    %v69 = vld [vmem:[%s1] sm:$0xf]
    %v70 = vadd.f32 %v68, 1e-05
    %v71 = vrsqrt.pop %v70
    %v72 = vmul.f32 %v69, %v71
    %v73 = vld [vmem:[%s2] sm:$0xf]
    %v74 = vmul.f32 %v64, %v72
    %v75 = vsub.f32 %v73, %v74
    %77 = vset.pattern.permute.xlu0 0
    %78 = vperm.xlu0 %77, %v72
    %v79 = vpop.permute.xlu0 %78
    %v81 = vunpack.c.l.s4 839922192
    %v82 = vunpack.c.0.s8 %v81
    %v83 = vlaneseq
    %v84 = vshrl.u32 %v83, 7
    %v85 = vsub.s32 %v82, %v84
    %v86 = vrot.slane %v79, %v85
    %v88 = vmul.f32 %v29, %v86
    %v89 = vmul.f32 %v30, %v86
    %91 = vset.pattern.permute.xlu0 0
    %92 = vperm.xlu0 %91, %v75
    %v93 = vpop.permute.xlu0 %92
    %v95 = vunpack.c.l.s4 839922192
    %v96 = vunpack.c.0.s8 %v95
    %v97 = vlaneseq
    %v98 = vshrl.u32 %v97, 7
    %v99 = vsub.s32 %v96, %v98
    %v100 = vrot.slane %v93, %v99
    %v102 = vadd.f32 %v88, %v100
    %v103 = vadd.f32 %v89, %v100
    %104 = vst [vmem:[#allocation5] sm:$0xff] %v102
    %105 = vst [vmem:[#allocation5 + $0x8] sm:$0xff] %v103
    // Predicated region
    $region18: #{tpu_custom_call.1} parent=1 // pred_check
      _
    $region19: #{tpu_custom_call.1} parent=1 // pred_check_branch
      %107 = sbr.rel (0) target = $region21
    $region20: #{tpu_custom_call.1} parent=1 // pred_region
      %s109 = ssub.s32 256, 256
      %110 = vsyncadd [#allocation4], %s109
      %s111 = sshll.u32 [#allocation5], 4
      %s112 = int_to_ptr.vmem [resolvable:$true] %s111
      %117 = dma.vmem_to_hbm [thread:$0]  %s112, 256, %s3, [#allocation4], 128, 128, 8
    $region21: #{tpu_custom_call.1} parent=1 // pred_fallthru
      _
    // Predicated region
    $region22: #{tpu_custom_call.1} parent=1 // pred_check
      _
    $region23: #{tpu_custom_call.1} parent=1 // pred_check_branch
      %119 = sbr.rel (0) target = $region25
    $region24: #{tpu_custom_call.1} parent=1 // pred_region
      %120 = dma.done [#allocation4], 256
    $region25: #{tpu_custom_call.1} parent=1 // pred_fallthru
      _
    %121 = vsyncpa [#allocation3], 1
    %122 = vsyncpa [#allocation4], 1

</llo_original>
